<compile_context>
chip_gen: v7x
topology: tpu7x:2x2x1
jax: 0.10.0
libtpu: 0.0.40
codegen_flags: <defaults>
</compile_context>

<pallas_src>
import jax
import jax.numpy as jnp
from jax.experimental import pallas as pl
from jax.experimental.pallas import tpu as pltpu


# ---------------------------------------------------------------------------
# Pallas kernel: fused 3-layer MLP over one (batch b, candidate-tile j) cell.
# Everything is computed transposed: rows = packed features / hidden units,
# columns = candidates (lane-dense).
# ---------------------------------------------------------------------------
def _mlp_kernel(yT_ref, hxb_ref, w0T_ref, w1T_ref, b1c_ref, w2T_ref, b2_ref,
                o_ref):
    """Shapes seen by the kernel (G = candidates packed per lane group):
      yT_ref  : (1, G*Dc, R)  native dtype  packed candidate features (columns = candidates)
      hxb_ref : (1, G*H, 1)   f32           x @ w0x + b0, tiled G times (b0 only on fused path)
      w0T_ref : (G*H, G*Dc)   bf16          block-diagonal w0_cand^T
      w1T_ref : (G*H, G*H)    bf16          block-diagonal w1^T
      b1c_ref : (G*H, 1)      f32
      w2T_ref : (>=8, G*H)    bf16          row g = w2^T placed at cols [g*H:(g+1)*H]
      b2_ref  : (1, 1)        f32
      o_ref   : (1, G, R)     f32           lane-dense energies, candidate n = g*r_total + r
    """
    f32, bf16 = jnp.float32, jnp.bfloat16
    g_out = o_ref.shape[1]

    # layer 0: (G*H, G*Dc) @ (G*Dc, R) -> (G*H, R); add per-batch x-contribution + b0
    h = jnp.dot(w0T_ref[...], yT_ref[0].astype(bf16), preferred_element_type=f32)
    h = jnp.maximum(h + hxb_ref[0], 0.0)

    # layer 1: (G*H, G*H) @ (G*H, R) -> (G*H, R)
    h = jnp.dot(w1T_ref[...], h.astype(bf16), preferred_element_type=f32)
    h = jnp.maximum(h + b1c_ref[...], 0.0)

    # head: same orientation, lane-dense (G, R) result -- no transpose needed.
    e = jnp.dot(w2T_ref[...], h.astype(bf16), preferred_element_type=f32)
    o_ref[0] = e[:g_out, :] + b2_ref[...]


# ---------------------------------------------------------------------------
# Wrapper: parameter packing + pallas_call with a (batch, candidate-tile) grid
# ---------------------------------------------------------------------------
def _round_up(v, m):
    return ((v + m - 1) // m) * m


def _block_diag_T(w, g):
    """Block-diagonal of w^T repeated g times: (g*Dout, g*Din)."""
    return jnp.kron(jnp.eye(g, dtype=jnp.float32), w.astype(jnp.float32).T)


def ebm_forward(params, x, y, *, tile_n=4096):
    """energies[b, n] = MLP(cat([x[b], y[b, n]], -1)) with the 3-layer ReLU MLP."""
    # TODO(synk): input-normalization / spectral-norm paths skipped -- the config
    # used here disables both (data_statistics is None, spectral_norm=False).
    w0, b0, w1, b1, w2, b2 = params
    hidden = w0.shape[1]
    g = max(1, 128 // hidden)          # candidates per lane group (G*H fills 128 lanes)
    gh = g * hidden
    x = x.astype(jnp.float32)

    if x.shape == y.shape:
        # Single-candidate path: fuse x/y features; the batch becomes the packed
        # candidate (lane) axis, so the whole batch runs in one grid cell.
        cand = jnp.concatenate([x, y.astype(jnp.float32)], axis=-1)[None]   # (1, B, Dx+Dy)
        w0c = w0
        hxb = b0.astype(jnp.float32)                                        # (1, H)
        final_shape = (x.shape[0], 1)
    else:
        cand = y                                                            # (B, N, Dy), native dtype
        dx = x.shape[-1]
        w0c = w0[dx:]
        # layer-0 x-contribution + b0, precomputed once (bf16 operands = kernel math)
        hxb = jnp.dot(x.astype(jnp.bfloat16), w0[:dx].astype(jnp.bfloat16),
                      preferred_element_type=jnp.float32) + b0.astype(jnp.float32)
        final_shape = (y.shape[0], y.shape[1])

    bp, n, dc = cand.shape

    # --- candidate packing geometry (everything lane-dense, >= 2 grid cells) ---
    r_raw = _round_up(pl.cdiv(n, g), 128)                 # packed columns needed
    r_tile_max = max(128, (max(tile_n, 128) // g // 128) * 128)
    if r_raw <= r_tile_max and bp >= 2:
        r_tile = r_raw                                    # one tile per batch element
    else:
        want_tiles = 2 if bp == 1 else 1                  # keep v7x's 2 TCs busy
        r_tile = min(r_tile_max, max(128, _round_up(pl.cdiv(r_raw, want_tiles), 128)))
    r_total = _round_up(r_raw, r_tile)
    n_pad = g * r_total

    # pack candidates: candidate index n -> (group g0 = n // r_total, column r = n % r_total)
    cand_p = cand if n_pad == n else jnp.pad(cand, ((0, 0), (0, n_pad - n), (0, 0)))
    yT = cand_p.reshape(bp, g, r_total, dc).transpose(0, 1, 3, 2).reshape(bp, g * dc, r_total)

    # packed parameters (tiny, one-time)
    hxb_col = jnp.tile(hxb, (1, g)).reshape(bp if hxb.shape[0] == bp else 1, gh, 1)
    if hxb_col.shape[0] != bp:                            # fused path: b0 shared by all rows
        hxb_col = jnp.broadcast_to(hxb_col, (bp, gh, 1))
    hxb_col = hxb_col.astype(jnp.float32)
    w0T = _block_diag_T(w0c, g).astype(jnp.bfloat16)                       # (G*H, G*Dc)
    w1T = _block_diag_T(w1, g).astype(jnp.bfloat16)                        # (G*H, G*H)
    b1c = jnp.tile(b1.astype(jnp.float32), (1, g)).reshape(gh, 1)
    head_rows = _round_up(g, 8)
    w2T = jnp.zeros((head_rows, gh), jnp.float32).at[:g].set(
        _block_diag_T(w2, g)).astype(jnp.bfloat16)                         # (>=8, G*H)
    b2c = b2.astype(jnp.float32).reshape(1, 1)

    grid = (bp, r_total // r_tile)
    const = lambda b, j: (0, 0)
    out = pl.pallas_call(
        _mlp_kernel,
        out_shape=jax.ShapeDtypeStruct((bp, g, r_total), jnp.float32),
        grid=grid,
        in_specs=[
            pl.BlockSpec((1, g * dc, r_tile), lambda b, j: (b, 0, j)),
            pl.BlockSpec((1, gh, 1), lambda b, j: (b, 0, 0)),
            pl.BlockSpec(w0T.shape, const),
            pl.BlockSpec(w1T.shape, const),
            pl.BlockSpec(b1c.shape, const),
            pl.BlockSpec(w2T.shape, const),
            pl.BlockSpec(b2c.shape, const),
        ],
        out_specs=pl.BlockSpec((1, g, r_tile), lambda b, j: (b, 0, j)),
        compiler_params=pltpu.CompilerParams(
            dimension_semantics=("parallel", "parallel")),
    )(yT, hxb_col, w0T, w1T, b1c, w2T, b2c)

    energies = out.reshape(bp, n_pad)[:, :n]              # flat index == candidate index
    return energies.reshape(final_shape)


# ---------------------------------------------------------------------------
# Deterministic parameter init (mimics nn.Linear default: U(-1/sqrt(fan_in), +))
# ---------------------------------------------------------------------------
def init_params(key, in_dim, hidden_dim, out_dim):
    def linear(kw, kb, fan_in, fan_out):
        bound = 1.0 / (fan_in ** 0.5)
        w = jax.random.uniform(kw, (fan_in, fan_out), jnp.float32, -bound, bound)
        b = jax.random.uniform(kb, (1, fan_out), jnp.float32, -bound, bound)
        return w, b

    k = jax.random.split(key, 6)
    w0, b0 = linear(k[0], k[1], in_dim, hidden_dim)
    w1, b1 = linear(k[2], k[3], hidden_dim, hidden_dim)
    w2, b2 = linear(k[4], k[5], hidden_dim, out_dim)
    return (w0, b0, w1, b1, w2, b2)


# ---------------------------------------------------------------------------
# Pure-JAX references for correctness checks
# ---------------------------------------------------------------------------
def ebm_forward_ref(params, x, y, *, bf16_operands=True):
    w0, b0, w1, b1, w2, b2 = params
    if x.shape == y.shape:
        fused = jnp.concatenate([x, y], axis=-1)[:, None, :]
    else:
        B, N, _ = y.shape
        x_exp = jnp.broadcast_to(x[:, None, :], (B, N, x.shape[-1]))
        fused = jnp.concatenate([x_exp, y], axis=-1)
    cast = (lambda a: a.astype(jnp.bfloat16)) if bf16_operands else (lambda a: a)
    h = jnp.maximum(jnp.dot(cast(fused), cast(w0),
                            preferred_element_type=jnp.float32) + b0[0], 0.0)
    h = jnp.maximum(jnp.dot(cast(h), cast(w1),
                            preferred_element_type=jnp.float32) + b1[0], 0.0)
    out = jnp.dot(cast(h), cast(w2), preferred_element_type=jnp.float32) + b2[0]
    return out[..., 0]


if __name__ == "__main__":
    key = jax.random.PRNGKey(0)
    k_x, k_y, k_p, k_x2, k_y2 = jax.random.split(key, 5)

    B, N = 2, 8          # batch, number of candidate actions
    x_dim, y_dim = 4, 4  # observation dim, action dim
    hidden_dim, out_dim = 32, 1
    in_dim = x_dim + y_dim

    x = jax.random.normal(k_x, (B, x_dim), jnp.float32)       # observations
    y = jax.random.normal(k_y, (B, N, y_dim), jnp.float32)    # candidate actions
    params = init_params(k_p, in_dim, hidden_dim, out_dim)

    # main path: (B, N) candidates
    energies = jax.block_until_ready(ebm_forward(params, x, y))
    assert energies.shape == (B, N)
    ref_mixed = ebm_forward_ref(params, x, y, bf16_operands=True)   # same bf16 math
    ref_f32 = ebm_forward_ref(params, x, y, bf16_operands=False)    # full-precision sanity
    assert jnp.allclose(energies, ref_mixed, atol=1e-4, rtol=1e-4)
    assert jnp.allclose(energies, ref_f32, atol=5e-2, rtol=5e-2)

    # single-candidate path (x.shape == y.shape)
    x2 = jax.random.normal(k_x2, (B, x_dim), jnp.float32)
    y2 = jax.random.normal(k_y2, (B, y_dim), jnp.float32)
    e2 = jax.block_until_ready(ebm_forward(params, x2, y2))
    assert e2.shape == (B, 1)
    ref2 = ebm_forward_ref(params, x2, y2, bf16_operands=True)
    assert jnp.allclose(e2, ref2, atol=1e-4, rtol=1e-4)

    print("KERNEL_OK")
</pallas_src>

<mosaic_0001>
module attributes {stable_mosaic.version = 11 : i64} {
  func.func @_mlp_kernel(%arg0: i32, %arg1: i32, %arg2: memref<1x16x128xf32, #tpu.memory_space<vmem>>, %arg3: memref<1x128x1xf32, #tpu.memory_space<vmem>>, %arg4: memref<128x16xbf16, #tpu.memory_space<vmem>>, %arg5: memref<128x128xbf16, #tpu.memory_space<vmem>>, %arg6: memref<128x1xf32, #tpu.memory_space<vmem>>, %arg7: memref<8x128xbf16, #tpu.memory_space<vmem>>, %arg8: memref<1x1xf32, #tpu.memory_space<vmem>>, %arg9: memref<1x4x128xf32, #tpu.memory_space<vmem>>) attributes {dimension_semantics = [#tpu.dimension_semantics<parallel>, #tpu.dimension_semantics<parallel>], iteration_bounds = array<i64: 2, 1>, scalar_prefetch = 0 : i64, scratch_operands = 0 : i64, tpu.core_type = #tpu.core_type<tc>, window_params = [{transform_indices = @transform_0, window_bounds = array<i64: 1, 16, 128>}, {transform_indices = @transform_1, window_bounds = array<i64: 1, 128, 1>}, {pipeline_mode = #tpu.pipeline_mode<synchronous>, transform_indices = @transform_2, window_bounds = array<i64: 128, 16>}, {pipeline_mode = #tpu.pipeline_mode<synchronous>, transform_indices = @transform_3, window_bounds = array<i64: 128, 128>}, {pipeline_mode = #tpu.pipeline_mode<synchronous>, transform_indices = @transform_4, window_bounds = array<i64: 128, 1>}, {pipeline_mode = #tpu.pipeline_mode<synchronous>, transform_indices = @transform_5, window_bounds = array<i64: 8, 128>}, {pipeline_mode = #tpu.pipeline_mode<synchronous>, transform_indices = @transform_6, window_bounds = array<i64: 1, 1>}, {transform_indices = @transform_7, window_bounds = array<i64: 1, 4, 128>}]} {
    %c0 = arith.constant 0 : index
    %c0_0 = arith.constant 0 : index
    %0 = vector.load %arg4[%c0, %c0_0] : memref<128x16xbf16, #tpu.memory_space<vmem>>, vector<128x16xbf16>
    %c0_1 = arith.constant 0 : index
    %c0_2 = arith.constant 0 : index
    %c0_3 = arith.constant 0 : index
    %1 = vector.load %arg2[%c0_1, %c0_2, %c0_3] : memref<1x16x128xf32, #tpu.memory_space<vmem>>, vector<1x16x128xf32>
    %2 = vector.shape_cast %1 : vector<1x16x128xf32> to vector<16x128xf32>
    %3 = arith.truncf %2 : vector<16x128xf32> to vector<16x128xbf16>
    %cst = arith.constant dense<0.000000e+00> : vector<128x128xf32>
    %4 = tpu.matmul %0, %3, %cst {dimension_numbers = #tpu.dot_dimension_numbers<[1], [0], [0], [1], [0, 0, 1, 1], [], []>} : vector<128x16xbf16>, vector<16x128xbf16>, vector<128x128xf32> -> vector<128x128xf32>
    %c0_4 = arith.constant 0 : index
    %c0_5 = arith.constant 0 : index
    %c0_6 = arith.constant 0 : index
    %5 = vector.load %arg3[%c0_4, %c0_5, %c0_6] : memref<1x128x1xf32, #tpu.memory_space<vmem>>, vector<1x128x1xf32>
    %6 = vector.shape_cast %5 : vector<1x128x1xf32> to vector<128x1xf32>
    %7 = vector.broadcast %6 : vector<128x1xf32> to vector<128x128xf32>
    %8 = arith.addf %4, %7 : vector<128x128xf32>
    %cst_7 = arith.constant 0.000000e+00 : f32
    %9 = vector.broadcast %cst_7 : f32 to vector<128x128xf32>
    %10 = arith.maximumf %8, %9 : vector<128x128xf32>
    %c0_8 = arith.constant 0 : index
    %c0_9 = arith.constant 0 : index
    %11 = vector.load %arg5[%c0_8, %c0_9] : memref<128x128xbf16, #tpu.memory_space<vmem>>, vector<128x128xbf16>
    %12 = arith.truncf %10 : vector<128x128xf32> to vector<128x128xbf16>
    %cst_10 = arith.constant dense<0.000000e+00> : vector<128x128xf32>
    %13 = tpu.matmul %11, %12, %cst_10 {dimension_numbers = #tpu.dot_dimension_numbers<[1], [0], [0], [1], [0, 0, 1, 1], [], []>} : vector<128x128xbf16>, vector<128x128xbf16>, vector<128x128xf32> -> vector<128x128xf32>
    %c0_11 = arith.constant 0 : index
    %c0_12 = arith.constant 0 : index
    %14 = vector.load %arg6[%c0_11, %c0_12] : memref<128x1xf32, #tpu.memory_space<vmem>>, vector<128x1xf32>
    %15 = vector.broadcast %14 : vector<128x1xf32> to vector<128x128xf32>
    %16 = arith.addf %13, %15 : vector<128x128xf32>
    %cst_13 = arith.constant 0.000000e+00 : f32
    %17 = vector.broadcast %cst_13 : f32 to vector<128x128xf32>
    %18 = arith.maximumf %16, %17 : vector<128x128xf32>
    %c0_14 = arith.constant 0 : index
    %c0_15 = arith.constant 0 : index
    %19 = vector.load %arg7[%c0_14, %c0_15] : memref<8x128xbf16, #tpu.memory_space<vmem>>, vector<8x128xbf16>
    %20 = arith.truncf %18 : vector<128x128xf32> to vector<128x128xbf16>
    %cst_16 = arith.constant dense<0.000000e+00> : vector<8x128xf32>
    %21 = tpu.matmul %19, %20, %cst_16 {dimension_numbers = #tpu.dot_dimension_numbers<[1], [0], [0], [1], [0, 0, 1, 1], [], []>} : vector<8x128xbf16>, vector<128x128xbf16>, vector<8x128xf32> -> vector<8x128xf32>
    %22 = vector.extract_strided_slice %21 {offsets = [0, 0], sizes = [4, 128], strides = [1, 1]} : vector<8x128xf32> to vector<4x128xf32>
    %c0_17 = arith.constant 0 : index
    %c0_18 = arith.constant 0 : index
    %23 = vector.load %arg8[%c0_17, %c0_18] : memref<1x1xf32, #tpu.memory_space<vmem>>, vector<1x1xf32>
    %24 = vector.broadcast %23 : vector<1x1xf32> to vector<4x128xf32>
    %25 = arith.addf %22, %24 : vector<4x128xf32>
    %c0_19 = arith.constant 0 : index
    %c0_20 = arith.constant 0 : index
    %c0_21 = arith.constant 0 : index
    %26 = vector.load %arg9[%c0_19, %c0_20, %c0_21] : memref<1x4x128xf32, #tpu.memory_space<vmem>>, vector<1x4x128xf32>
    %27 = vector.shape_cast %26 : vector<1x4x128xf32> to vector<4x128xf32>
    %28 = vector.shape_cast %25 : vector<4x128xf32> to vector<1x4x128xf32>
    tpu.vector_store %arg9[%c0_19, %c0_20, %c0_21], %28 {strides = array<i32>} : memref<1x4x128xf32, #tpu.memory_space<vmem>>, vector<1x4x128xf32>,
    return
  }
  func.func @transform_0(%arg0: i32, %arg1: i32) -> (i32, i32, i32) {
    %c0_i32 = arith.constant 0 : i32
    %c0_i32_0 = arith.constant 0 : i32
    return %arg0, %c0_i32, %arg1 : i32, i32, i32
  }
  func.func @transform_1(%arg0: i32, %arg1: i32) -> (i32, i32, i32) {
    %c0_i32 = arith.constant 0 : i32
    %c0_i32_0 = arith.constant 0 : i32
    %c0_i32_1 = arith.constant 0 : i32
    return %arg0, %c0_i32, %c0_i32_0 : i32, i32, i32
  }
  func.func @transform_2(%arg0: i32, %arg1: i32) -> (i32, i32) {
    %c0_i32 = arith.constant 0 : i32
    %c0_i32_0 = arith.constant 0 : i32
    %c0_i32_1 = arith.constant 0 : i32
    return %c0_i32, %c0_i32_0 : i32, i32
  }
  func.func @transform_3(%arg0: i32, %arg1: i32) -> (i32, i32) {
    %c0_i32 = arith.constant 0 : i32
    %c0_i32_0 = arith.constant 0 : i32
    %c0_i32_1 = arith.constant 0 : i32
    return %c0_i32, %c0_i32_0 : i32, i32
  }
  func.func @transform_4(%arg0: i32, %arg1: i32) -> (i32, i32) {
    %c0_i32 = arith.constant 0 : i32
    %c0_i32_0 = arith.constant 0 : i32
    %c0_i32_1 = arith.constant 0 : i32
    return %c0_i32, %c0_i32_0 : i32, i32
  }
  func.func @transform_5(%arg0: i32, %arg1: i32) -> (i32, i32) {
    %c0_i32 = arith.constant 0 : i32
    %c0_i32_0 = arith.constant 0 : i32
    %c0_i32_1 = arith.constant 0 : i32
    return %c0_i32, %c0_i32_0 : i32, i32
  }
  func.func @transform_6(%arg0: i32, %arg1: i32) -> (i32, i32) {
    %c0_i32 = arith.constant 0 : i32
    %c0_i32_0 = arith.constant 0 : i32
    %c0_i32_1 = arith.constant 0 : i32
    return %c0_i32, %c0_i32_0 : i32, i32
  }
  func.func @transform_7(%arg0: i32, %arg1: i32) -> (i32, i32, i32) {
    %c0_i32 = arith.constant 0 : i32
    %c0_i32_0 = arith.constant 0 : i32
    return %arg0, %c0_i32, %arg1 : i32, i32, i32
  }
}

</mosaic_0001>

<llo_original>
// kernel: tpu_custom_call.1
$region0: #{tpu_custom_call.1}
  #allocation0 [shape = 'u32[]', space=smem, size = 0x4, offset = 0x4, fixed_abs, tag = 'smem constant byte address 0x4 - core index']
  #allocation1 [shape = 'u32[144,128]{1,0:T(1,128)}', space=vmem, size = 0x12000, scoped, tag = 'internal scratch']
  #allocation2 [shape = 'f32[1,1]{1,0:T(1,128)S(1)}', space=vmem, size = 0x200, scoped, tag = 'scoped memory for tpu_custom_call.1']
  %s0 = inlined_call_operand.vmem [shape: f32[2,16,128], index: 0, kind: input, shape index: {}]
  %s1 = inlined_call_operand.vmem [shape: f32[2,128,1], index: 1, kind: input, shape index: {}]
  %s2 = inlined_call_operand.vmem [shape: bf16[128,16], index: 2, kind: input, shape index: {}]
  %s3 = inlined_call_operand.vmem [shape: bf16[128,128], index: 3, kind: input, shape index: {}]
  %s4 = inlined_call_operand.vmem [shape: f32[128,1], index: 4, kind: input, shape index: {}]
  %s5 = inlined_call_operand.vmem [shape: bf16[8,128], index: 5, kind: input, shape index: {}]
  %s6 = inlined_call_operand.<no memory space> [shape: f32[1,1], index: 6, kind: input, shape index: {}]
  %s7 = inlined_call_operand.hbm [shape: f32[2,4,128], index: 7, kind: output, shape index: {}]
  %s8 = sld [smem:[#allocation0]]
  $region61: #{tpu_custom_call.1} parent=0
    _
  %s10 = ssub.s32 1, %s8
  %s11 = scalar_select 0, %s10, %s8
  %v12 = vstv %s6
  %13 = vst [vmem:[#allocation2] sm:$0x1] %v12
  $region1: #{tpu_custom_call.1} parent=0
    #allocation3 [shape = 'u8[4096]{0}', space=vmem, size = 0x1000, scoped, tag = 'output window, operand 0']
    #allocation4 [shape = 's32[2]{0}', space=sflag, size = 0x8, scoped, tag = 'scoped memory for tpu_custom_call.1']
    %14 = vsyncpa [#allocation4], 0
    %s15 = scalar_lea.sflag [#allocation4], 1
    %16 = vsyncpa %s15, 0
    loop: start=0, step=1, limit=4
    $region2: #{tpu_custom_call.1} parent=1 // loop_pre_header
      _
    $region3: #{tpu_custom_call.1} parent=1 // loop_header
      %s18 = sphi 0, %s22
      %p19 = scmp.ge.s32.totalorder %s18, 4
      %s25 = sphi 0, %s37
      %s26 = sphi 0, %s33
      %s27 = sphi 0, %s25
      %s28 = sphi 0, %s26
      %s29 = sphi 0, %s27
      %s30 = sphi 0, %s28
      %s42 = sphi 0, %s44
      %s45 = sphi 0, %s42
      %s46 = sphi 0, %s45
      %s62 = sphi 0, %s46
      %s68 = sphi 0, %s70
      %s71 = sphi 0, %s68
      %s72 = sphi 0, %s71
      %s88 = sphi 0, %s72
      %s92 = sphi 0, %s92
      %s94 = sphi 0, %s92
      %s95 = sphi 0, %s94
      %s109 = sphi 0, %s95
      %s113 = sphi 0, %s113
      %s115 = sphi 0, %s113
      %s116 = sphi 0, %s115
      %s130 = sphi 0, %s116
      %s134 = sphi 0, %s134
      %s136 = sphi 0, %s134
      %s137 = sphi 0, %s136
      %s151 = sphi 0, %s137
      %s155 = sphi 0, %s155
      %s157 = sphi 0, %s155
      %s158 = sphi 0, %s157
      %s172 = sphi 0, %s158
      %s176 = sphi 0, %s176
      %s178 = sphi 0, %s176
      %s179 = sphi 0, %s178
      %s193 = sphi 0, %s179
      %s201 = sphi 0, %s203
      %s204 = sphi 0, %s201
      %s205 = sphi 0, %s204
      %s221 = sphi 0, %s205
    $region4: #{tpu_custom_call.1} parent=1 // loop_header_branch
      %21 = sbr.rel (%p19) target = $region8
    $region5: #{tpu_custom_call.1} parent=1 // loop_body
      %s23 = ssub.s32 %s18, 1
      %s24 = ssub.s32 %s18, 2
      %s31 = sadd.s32 1, %s26
      %p32 = scmp.ge.s32.totalorder %s31, 1
      %s33 = scalar_select %p32, 0, %s31
      %s34 = sadd.s32 1, %s25
      %s35 = scalar_select %p32, %s34, %s25
      %p36 = scmp.ge.s32.totalorder %s35, 2
      %s37 = scalar_select %p36, 0, %s35
      %s38 = ssub.s32 %s25, %s37
      %s39 = ssub.s32 %s26, %s33
      %s40 = sor.u32 %s38, %s39
      %p41 = scmp.eq.s32.totalorder %s40, 0
      %s43 = sadd.s32 %s42, 1
      %s44 = scalar_select %p41, %s42, %s43
      %p47 = pneg %p41
      %p48 = scmp.eq.s32.totalorder %s18, 1
      %p49 = por %p47, %p48
      %p50 = scmp.ne.s32.totalorder %s42, %s45
      %p51 = scmp.eq.s32.totalorder %s18, 0
      %p52 = por %p50, %p51
      %p53 = scmp.ne.s32.totalorder %s42, %s45
      %p54 = scmp.eq.s32.totalorder %s23, 1
      %p55 = por %p53, %p54
      %p56 = scmp.ne.s32.totalorder %s45, %s46
      %p57 = scmp.eq.s32.totalorder %s23, 0
      %p58 = por %p56, %p57
      %p59 = scmp.ne.s32.totalorder %s45, %s46
      %p60 = scmp.eq.s32.totalorder %s24, 1
      %p61 = por %p59, %p60
      %p63 = scmp.ne.s32.totalorder %s46, %s62
      %p64 = scmp.eq.s32.totalorder %s24, 0
      %p65 = por %p63, %p64
      %s66 = ssub.s32 %s25, %s37
      %p67 = scmp.eq.s32.totalorder %s66, 0
      %s69 = sadd.s32 %s68, 1
      %s70 = scalar_select %p67, %s68, %s69
      %p73 = pneg %p67
      %p74 = scmp.eq.s32.totalorder %s18, 1
      %p75 = por %p73, %p74
      %p76 = scmp.ne.s32.totalorder %s68, %s71
      %p77 = scmp.eq.s32.totalorder %s18, 0
      %p78 = por %p76, %p77
      %p79 = scmp.ne.s32.totalorder %s68, %s71
      %p80 = scmp.eq.s32.totalorder %s23, 1
      %p81 = por %p79, %p80
      %p82 = scmp.ne.s32.totalorder %s71, %s72
      %p83 = scmp.eq.s32.totalorder %s23, 0
      %p84 = por %p82, %p83
      %p85 = scmp.ne.s32.totalorder %s71, %s72
      %p86 = scmp.eq.s32.totalorder %s24, 1
      %p87 = por %p85, %p86
      %p89 = scmp.ne.s32.totalorder %s72, %s88
      %p90 = scmp.eq.s32.totalorder %s24, 0
      %p91 = por %p89, %p90
      %s93 = sadd.s32 %s92, 1
      %p96 = scmp.eq.s32.totalorder %s18, 1
      %p97 = scmp.ne.s32.totalorder %s92, %s94
      %p98 = scmp.eq.s32.totalorder %s18, 0
      %p99 = por %p97, %p98
      %p100 = scmp.ne.s32.totalorder %s92, %s94
      %p101 = scmp.eq.s32.totalorder %s23, 1
      %p102 = por %p100, %p101
      %p103 = scmp.ne.s32.totalorder %s94, %s95
      %p104 = scmp.eq.s32.totalorder %s23, 0
      %p105 = por %p103, %p104
      %p106 = scmp.ne.s32.totalorder %s94, %s95
      %p107 = scmp.eq.s32.totalorder %s24, 1
      %p108 = por %p106, %p107
      %p110 = scmp.ne.s32.totalorder %s95, %s109
      %p111 = scmp.eq.s32.totalorder %s24, 0
      %p112 = por %p110, %p111
      %s114 = sadd.s32 %s113, 1
      %p117 = scmp.eq.s32.totalorder %s18, 1
      %p118 = scmp.ne.s32.totalorder %s113, %s115
      %p119 = scmp.eq.s32.totalorder %s18, 0
      %p120 = por %p118, %p119
      %p121 = scmp.ne.s32.totalorder %s113, %s115
      %p122 = scmp.eq.s32.totalorder %s23, 1
      %p123 = por %p121, %p122
      %p124 = scmp.ne.s32.totalorder %s115, %s116
      %p125 = scmp.eq.s32.totalorder %s23, 0
      %p126 = por %p124, %p125
      %p127 = scmp.ne.s32.totalorder %s115, %s116
      %p128 = scmp.eq.s32.totalorder %s24, 1
      %p129 = por %p127, %p128
      %p131 = scmp.ne.s32.totalorder %s116, %s130
      %p132 = scmp.eq.s32.totalorder %s24, 0
      %p133 = por %p131, %p132
      %s135 = sadd.s32 %s134, 1
      %p138 = scmp.eq.s32.totalorder %s18, 1
      %p139 = scmp.ne.s32.totalorder %s134, %s136
      %p140 = scmp.eq.s32.totalorder %s18, 0
      %p141 = por %p139, %p140
      %p142 = scmp.ne.s32.totalorder %s134, %s136
      %p143 = scmp.eq.s32.totalorder %s23, 1
      %p144 = por %p142, %p143
      %p145 = scmp.ne.s32.totalorder %s136, %s137
      %p146 = scmp.eq.s32.totalorder %s23, 0
      %p147 = por %p145, %p146
      %p148 = scmp.ne.s32.totalorder %s136, %s137
      %p149 = scmp.eq.s32.totalorder %s24, 1
      %p150 = por %p148, %p149
      %p152 = scmp.ne.s32.totalorder %s137, %s151
      %p153 = scmp.eq.s32.totalorder %s24, 0
      %p154 = por %p152, %p153
      %s156 = sadd.s32 %s155, 1
      %p159 = scmp.eq.s32.totalorder %s18, 1
      %p160 = scmp.ne.s32.totalorder %s155, %s157
      %p161 = scmp.eq.s32.totalorder %s18, 0
      %p162 = por %p160, %p161
      %p163 = scmp.ne.s32.totalorder %s155, %s157
      %p164 = scmp.eq.s32.totalorder %s23, 1
      %p165 = por %p163, %p164
      %p166 = scmp.ne.s32.totalorder %s157, %s158
      %p167 = scmp.eq.s32.totalorder %s23, 0
      %p168 = por %p166, %p167
      %p169 = scmp.ne.s32.totalorder %s157, %s158
      %p170 = scmp.eq.s32.totalorder %s24, 1
      %p171 = por %p169, %p170
      %p173 = scmp.ne.s32.totalorder %s158, %s172
      %p174 = scmp.eq.s32.totalorder %s24, 0
      %p175 = por %p173, %p174
      %s177 = sadd.s32 %s176, 1
      %p180 = scmp.eq.s32.totalorder %s18, 1
      %p181 = scmp.ne.s32.totalorder %s176, %s178
      %p182 = scmp.eq.s32.totalorder %s18, 0
      %p183 = por %p181, %p182
      %p184 = scmp.ne.s32.totalorder %s176, %s178
      %p185 = scmp.eq.s32.totalorder %s23, 1
      %p186 = por %p184, %p185
      %p187 = scmp.ne.s32.totalorder %s178, %s179
      %p188 = scmp.eq.s32.totalorder %s23, 0
      %p189 = por %p187, %p188
      %p190 = scmp.ne.s32.totalorder %s178, %s179
      %p191 = scmp.eq.s32.totalorder %s24, 1
      %p192 = por %p190, %p191
      %p194 = scmp.ne.s32.totalorder %s179, %s193
      %p195 = scmp.eq.s32.totalorder %s24, 0
      %p196 = por %p194, %p195
      %s197 = ssub.s32 %s25, %s37
      %s198 = ssub.s32 %s26, %s33
      %s199 = sor.u32 %s197, %s198
      %p200 = scmp.eq.s32.totalorder %s199, 0
      %s202 = sadd.s32 %s201, 1
      %s203 = scalar_select %p200, %s201, %s202
      %p206 = pneg %p200
      %p207 = scmp.eq.s32.totalorder %s18, 1
      %p208 = por %p206, %p207
      %p209 = scmp.ne.s32.totalorder %s201, %s204
      %p210 = scmp.eq.s32.totalorder %s18, 0
      %p211 = por %p209, %p210
      %p212 = scmp.ne.s32.totalorder %s201, %s204
      %p213 = scmp.eq.s32.totalorder %s23, 1
      %p214 = por %p212, %p213
      %p215 = scmp.ne.s32.totalorder %s204, %s205
      %p216 = scmp.eq.s32.totalorder %s23, 0
      %p217 = por %p215, %p216
      %p218 = scmp.ne.s32.totalorder %s204, %s205
      %p219 = scmp.eq.s32.totalorder %s24, 1
      %p220 = por %p218, %p219
      %p222 = scmp.ne.s32.totalorder %s205, %s221
      %p223 = scmp.eq.s32.totalorder %s24, 0
      %p224 = por %p222, %p223
      %p225 = scmp.le.s32.totalorder 1, %s18
      %p226 = scmp.lt.s32.totalorder %s18, 3
      %p227 = pnand %p225, %p226
      %p228 = pneg %p227
      // Predicated region
      $region9: #{tpu_custom_call.1} parent=5 // pred_check
        _
      $region10: #{tpu_custom_call.1} parent=5 // pred_check_branch
        %230 = sbr.rel (%p227) target = $region12
      $region11: #{tpu_custom_call.1} parent=5 // pred_region
        %s231 = ssub.s32 %s18, 1
        // Predicated region
        $region13: #{tpu_custom_call.1} parent=11 // pred_check
          %p232 = pneg %p105
        $region14: #{tpu_custom_call.1} parent=11 // pred_check_branch
          %234 = sbr.rel (%p232) target = $region16
        $region15: #{tpu_custom_call.1} parent=11 // pred_region
          _
        $region16: #{tpu_custom_call.1} parent=11 // pred_fallthru
          _
        // Predicated region
        $region17: #{tpu_custom_call.1} parent=11 // pred_check
          %p235 = pneg %p126
        $region18: #{tpu_custom_call.1} parent=11 // pred_check_branch
          %237 = sbr.rel (%p235) target = $region20
        $region19: #{tpu_custom_call.1} parent=11 // pred_region
          _
        $region20: #{tpu_custom_call.1} parent=11 // pred_fallthru
          _
        // Predicated region
        $region21: #{tpu_custom_call.1} parent=11 // pred_check
          %p238 = pneg %p147
        $region22: #{tpu_custom_call.1} parent=11 // pred_check_branch
          %240 = sbr.rel (%p238) target = $region24
        $region23: #{tpu_custom_call.1} parent=11 // pred_region
          _
        $region24: #{tpu_custom_call.1} parent=11 // pred_fallthru
          _
        // Predicated region
        $region25: #{tpu_custom_call.1} parent=11 // pred_check
          %p241 = pneg %p168
        $region26: #{tpu_custom_call.1} parent=11 // pred_check_branch
          %243 = sbr.rel (%p241) target = $region28
        $region27: #{tpu_custom_call.1} parent=11 // pred_region
          _
        $region28: #{tpu_custom_call.1} parent=11 // pred_fallthru
          _
        // Predicated region
        $region29: #{tpu_custom_call.1} parent=11 // pred_check
          %p244 = pneg %p189
        $region30: #{tpu_custom_call.1} parent=11 // pred_check_branch
          %246 = sbr.rel (%p244) target = $region32
        $region31: #{tpu_custom_call.1} parent=11 // pred_region
          _
        $region32: #{tpu_custom_call.1} parent=11 // pred_fallthru
          _
      $region12: #{tpu_custom_call.1} parent=5 // pred_fallthru
        _
      %p247 = scmp.lt.s32.totalorder %s18, 2
      // Predicated region
      $region33: #{tpu_custom_call.1} parent=5 // pred_check
        %p248 = pneg %p247
      $region34: #{tpu_custom_call.1} parent=5 // pred_check_branch
        %250 = sbr.rel (%p248) target = $region36
      $region35: #{tpu_custom_call.1} parent=5 // pred_region
        // Predicated region
        $region37: #{tpu_custom_call.1} parent=35 // pred_check
          %p251 = pneg %p52
        $region38: #{tpu_custom_call.1} parent=35 // pred_check_branch
          %253 = sbr.rel (%p251) target = $region40
        $region39: #{tpu_custom_call.1} parent=35 // pred_region
          %p254 = scmp.lt.s32.totalorder %s25, 1
          %s255 = scalar_select %p254, %s25, 1
          %p256 = scmp.lt.s32.totalorder %s26, 0
          %s257 = scalar_select %p256, %s26, 0
          %s258 = smul.addr %s255, 2
          %s259 = sadd.s32 %s257, %s258
          %s260 = smul.addr %s259, 8
          %s261 = scalar_lea.vmem %s0, %s260
        $region40: #{tpu_custom_call.1} parent=35 // pred_fallthru
          _
        // Predicated region
        $region41: #{tpu_custom_call.1} parent=35 // pred_check
          %p262 = pneg %p78
        $region42: #{tpu_custom_call.1} parent=35 // pred_check_branch
          %264 = sbr.rel (%p262) target = $region44
        $region43: #{tpu_custom_call.1} parent=35 // pred_region
          %p265 = scmp.lt.s32.totalorder %s25, 1
          %s266 = scalar_select %p265, %s25, 1
          %s267 = smul.addr %s266, 16
          %s268 = smul.addr %s267, 8
          %s269 = scalar_lea.vmem %s1, %s268
        $region44: #{tpu_custom_call.1} parent=35 // pred_fallthru
          _
      $region36: #{tpu_custom_call.1} parent=5 // pred_fallthru
        _
      %p270 = scmp.le.s32.totalorder 1, %s18
      %p271 = scmp.lt.s32.totalorder %s18, 3
      %p272 = pnand %p270, %p271
      %p273 = pneg %p272
      // Predicated region
      $region45: #{tpu_custom_call.1} parent=5 // pred_check
        _
      $region46: #{tpu_custom_call.1} parent=5 // pred_check_branch
        %275 = sbr.rel (%p272) target = $region48
      $region47: #{tpu_custom_call.1} parent=5 // pred_region
        %s276 = ssub.s32 %s18, 1
        %p277 = scmp.lt.s32.totalorder %s27, 1
        %s278 = scalar_select %p277, %s27, 1
        %p279 = scmp.lt.s32.totalorder %s28, 0
        %s280 = scalar_select %p279, %s28, 0
        %s281 = smul.addr %s278, 2
        %s282 = sadd.s32 %s280, %s281
        %s283 = smul.addr %s282, 8
        %s284 = scalar_lea.vmem %s0, %s283
        %p285 = pneg %p58
        %p286 = pneg %p55
        %p287 = scmp.lt.s32.totalorder %s27, 1
        %s288 = scalar_select %p287, %s27, 1
        %s289 = smul.addr %s288, 16
        %s290 = smul.addr %s289, 8
        %s291 = scalar_lea.vmem %s1, %s290
        %p292 = pneg %p84
        %p293 = pneg %p81
        %p294 = pneg %p105
        %p295 = pneg %p102
        %p296 = pneg %p126
        %p297 = pneg %p123
        %p298 = pneg %p147
        %p299 = pneg %p144
        %p300 = pneg %p168
        %p301 = pneg %p165
        %p302 = pneg %p189
        %p303 = pneg %p186
        %p304 = pneg %p217
        %p305 = pneg %p214
        %s306 = sand.u32 %s204, 1
        %s307 = scalar_lea.sflag [#allocation4], %s306
        %s308 = sand.u32 %s204, 1
        %s309 = smul.addr %s308, 4
        %s310 = scalar_lea.vmem [#allocation3], %s309
        %p311 = scmp.lt.s32.totalorder %s27, 1
        %s312 = scalar_select %p311, %s27, 1
        %p313 = scmp.lt.s32.totalorder %s28, 0
        %s314 = scalar_select %p313, %s28, 0
        %s315 = smul.addr %s312, 2
        %s316 = sadd.s32 %s314, %s315
        %s317 = smul.addr %s316, 8
        %s318 = scalar_lea.vmem %s0, %s317
        %p319 = scmp.lt.s32.totalorder %s27, 1
        %s320 = scalar_select %p319, %s27, 1
        %s321 = smul.addr %s320, 16
        %s322 = smul.addr %s321, 8
        %s323 = scalar_lea.vmem %s1, %s322
        %v325 = vld [vmem:[%s2] sm:$0xf]
        %v326 = vld [vmem:[%s2 + $0x4] sm:$0xf]
        %v327 = vld [vmem:[%s2 + $0x8] sm:$0xf]
        %v328 = vld [vmem:[%s2 + $0xc] sm:$0xf]
        %v329 = vld [vmem:[%s2 + $0x10] sm:$0xf]
        %v330 = vld [vmem:[%s2 + $0x14] sm:$0xf]
        %v331 = vld [vmem:[%s2 + $0x18] sm:$0xf]
        %v332 = vld [vmem:[%s2 + $0x1c] sm:$0xf]
        %v333 = vld [vmem:[%s2 + $0x20] sm:$0xf]
        %v334 = vld [vmem:[%s2 + $0x24] sm:$0xf]
        %v335 = vld [vmem:[%s2 + $0x28] sm:$0xf]
        %v336 = vld [vmem:[%s2 + $0x2c] sm:$0xf]
        %v337 = vld [vmem:[%s2 + $0x30] sm:$0xf]
        %v338 = vld [vmem:[%s2 + $0x34] sm:$0xf]
        %v339 = vld [vmem:[%s2 + $0x38] sm:$0xf]
        %v340 = vld [vmem:[%s2 + $0x3c] sm:$0xf]
        %v341 = vld [vmem:[%s318] sm:$0xff]
        %v342 = vld [vmem:[%s318 + $0x8] sm:$0xff]
        %v343 = vpack.c.bf16 %v342, %v341
        %v344 = vld [vmem:[%s323] sm:$0xff]
        %v345 = vld [vmem:[%s323 + $0x8] sm:$0xff]
        %v346 = vld [vmem:[%s323 + $0x10] sm:$0xff]
        %v347 = vld [vmem:[%s323 + $0x18] sm:$0xff]
        %v348 = vld [vmem:[%s323 + $0x20] sm:$0xff]
        %v349 = vld [vmem:[%s323 + $0x28] sm:$0xff]
        %v350 = vld [vmem:[%s323 + $0x30] sm:$0xff]
        %v351 = vld [vmem:[%s323 + $0x38] sm:$0xff]
        %v352 = vld [vmem:[%s323 + $0x40] sm:$0xff]
        %v353 = vld [vmem:[%s323 + $0x48] sm:$0xff]
        %v354 = vld [vmem:[%s323 + $0x50] sm:$0xff]
        %v355 = vld [vmem:[%s323 + $0x58] sm:$0xff]
        %v356 = vld [vmem:[%s323 + $0x60] sm:$0xff]
        %v357 = vld [vmem:[%s323 + $0x68] sm:$0xff]
        %v358 = vld [vmem:[%s323 + $0x70] sm:$0xff]
        %v359 = vld [vmem:[%s323 + $0x78] sm:$0xff]
        %361 = vset.pattern.permute.xlu0 0
        %362 = vperm.xlu0 %361, %v344
        %v363 = vpop.permute.xlu0 %362
        %366 = vset.pattern.permute.xlu0 0
        %367 = vperm.xlu0 %366, %v345
        %v368 = vpop.permute.xlu0 %367
        %371 = vset.pattern.permute.xlu0 0
        %372 = vperm.xlu0 %371, %v346
        %v373 = vpop.permute.xlu0 %372
        %376 = vset.pattern.permute.xlu0 0
        %377 = vperm.xlu0 %376, %v347
        %v378 = vpop.permute.xlu0 %377
        %381 = vset.pattern.permute.xlu0 0
        %382 = vperm.xlu0 %381, %v348
        %v383 = vpop.permute.xlu0 %382
        %386 = vset.pattern.permute.xlu0 0
        %387 = vperm.xlu0 %386, %v349
        %v388 = vpop.permute.xlu0 %387
        %391 = vset.pattern.permute.xlu0 0
        %392 = vperm.xlu0 %391, %v350
        %v393 = vpop.permute.xlu0 %392
        %396 = vset.pattern.permute.xlu0 0
        %397 = vperm.xlu0 %396, %v351
        %v398 = vpop.permute.xlu0 %397
        %401 = vset.pattern.permute.xlu0 0
        %402 = vperm.xlu0 %401, %v352
        %v403 = vpop.permute.xlu0 %402
        %406 = vset.pattern.permute.xlu0 0
        %407 = vperm.xlu0 %406, %v353
        %v408 = vpop.permute.xlu0 %407
        %411 = vset.pattern.permute.xlu0 0
        %412 = vperm.xlu0 %411, %v354
        %v413 = vpop.permute.xlu0 %412
        %416 = vset.pattern.permute.xlu0 0
        %417 = vperm.xlu0 %416, %v355
        %v418 = vpop.permute.xlu0 %417
        %421 = vset.pattern.permute.xlu0 0
        %422 = vperm.xlu0 %421, %v356
        %v423 = vpop.permute.xlu0 %422
        %426 = vset.pattern.permute.xlu0 0
        %427 = vperm.xlu0 %426, %v357
        %v428 = vpop.permute.xlu0 %427
        %431 = vset.pattern.permute.xlu0 0
        %432 = vperm.xlu0 %431, %v358
        %v433 = vpop.permute.xlu0 %432
        %436 = vset.pattern.permute.xlu0 0
        %437 = vperm.xlu0 %436, %v359
        %v438 = vpop.permute.xlu0 %437
        %v456 = vunpack.c.l.b16 %v325
        %v457 = vunpack.c.l.b16 %v326
        %v458 = vunpack.c.l.b16 %v327
        %v459 = vunpack.c.l.b16 %v328
        %v460 = vunpack.c.l.b16 %v329
        %v461 = vunpack.c.l.b16 %v330
        %v462 = vunpack.c.l.b16 %v331
        %v463 = vunpack.c.l.b16 %v332
        %v464 = vunpack.c.l.b16 %v333
        %v465 = vunpack.c.l.b16 %v334
        %v466 = vunpack.c.l.b16 %v335
        %v467 = vunpack.c.l.b16 %v336
        %v468 = vunpack.c.l.b16 %v337
        %v469 = vunpack.c.l.b16 %v338
        %v470 = vunpack.c.l.b16 %v339
        %v471 = vunpack.c.l.b16 %v340
        %v472 = vpack.c.b16 %v457, %v456
        %v473 = vpack.c.b16 %v459, %v458
        %v474 = vpack.c.b16 %v461, %v460
        %v475 = vpack.c.b16 %v463, %v462
        %v476 = vpack.c.b16 %v465, %v464
        %v477 = vpack.c.b16 %v467, %v466
        %v478 = vpack.c.b16 %v469, %v468
        %v479 = vpack.c.b16 %v471, %v470
        %vm480 = vcmask 130048
        %v482 = vsel %vm480, %v472, 0
        %v485 = vsel %vm480, %v473, 0
        %v488 = vsel %vm480, %v474, 0
        %v491 = vsel %vm480, %v475, 0
        %v494 = vsel %vm480, %v476, 0
        %v497 = vsel %vm480, %v477, 0
        %v500 = vsel %vm480, %v478, 0
        %v503 = vsel %vm480, %v479, 0
        %505 = vmatprep.subr.bf16.mxu0 0
        %506 = vmatpush1.bf16.msra.mxu0 %v343
        %507 = vmatprep.subr.bf16.mxu0 0
        %508 = vmatpush1.bf16.msra.mxu0 0
        %509 = vmatprep.subr.bf16.mxu0 0
        %510 = vmatpush1.bf16.msra.mxu0 0
        %511 = vmatprep.subr.bf16.mxu0 0
        %512 = vmatpush1.bf16.msra.mxu0 0
        %513 = vmatprep.subr.bf16.mxu0 0
        %514 = vmatpush1.bf16.msra.mxu0 0
        %515 = vmatprep.subr.bf16.mxu0 0
        %516 = vmatpush1.bf16.msra.mxu0 0
        %517 = vmatprep.subr.bf16.mxu0 0
        %518 = vmatpush1.bf16.msra.mxu0 0
        %519 = vmatprep.subr.bf16.mxu0 0
        %520 = vmatpush1.bf16.msra.mxu0 0
        %521 = vmatprep.subr.bf16.mxu0 0
        %522 = vmatpush1.bf16.msra.mxu0 0
        %523 = vmatprep.subr.bf16.mxu0 0
        %524 = vmatpush1.bf16.msra.mxu0 0
        %525 = vmatprep.subr.bf16.mxu0 0
        %526 = vmatpush1.bf16.msra.mxu0 0
        %527 = vmatprep.subr.bf16.mxu0 0
        %528 = vmatpush1.bf16.msra.mxu0 0
        %529 = vmatprep.subr.bf16.mxu0 0
        %530 = vmatpush1.bf16.msra.mxu0 0
        %531 = vmatprep.subr.bf16.mxu0 0
        %532 = vmatpush1.bf16.msra.mxu0 0
        %533 = vmatprep.subr.bf16.mxu0 0
        %534 = vmatpush1.bf16.msra.mxu0 0
        %535 = vmatprep.subr.bf16.mxu0 0
        %536 = vmatpush1.bf16.msra.mxu0 0
        %537 = vmatprep.mubr.bf16.mxu0 0
        %538 = vmatmul.mubr.bf16.gmra.mrb[0].mxu0 %v482
        %v539 = vpop.f32.mrb[0].mxu0
        %v540 = vadd.f32 %v363, %v539
        %v541 = vpop.f32.mrb[0].mxu0
        %v542 = vpop.f32.mrb[0].mxu0
        %v543 = vadd.f32 %v368, %v542
        %v544 = vpop.f32.mrb[0].mxu0
        %545 = vmatprep.mubr.bf16.mxu0 0
        %546 = vmatmul.mubr.bf16.gmra.mrb[0].mxu0 %v485
        %v547 = vpop.f32.mrb[0].mxu0
        %v548 = vadd.f32 %v373, %v547
        %v549 = vpop.f32.mrb[0].mxu0
        %v550 = vpop.f32.mrb[0].mxu0
        %v551 = vadd.f32 %v378, %v550
        %v552 = vpop.f32.mrb[0].mxu0
        %553 = vmatprep.mubr.bf16.mxu0 0
        %554 = vmatmul.mubr.bf16.gmra.mrb[0].mxu0 %v488
        %v555 = vpop.f32.mrb[0].mxu0
        %v556 = vadd.f32 %v383, %v555
        %v557 = vpop.f32.mrb[0].mxu0
        %v558 = vpop.f32.mrb[0].mxu0
        %v559 = vadd.f32 %v388, %v558
        %v560 = vpop.f32.mrb[0].mxu0
        %561 = vmatprep.mubr.bf16.mxu0 0
        %562 = vmatmul.mubr.bf16.gmra.mrb[0].mxu0 %v491
        %v563 = vpop.f32.mrb[0].mxu0
        %v564 = vadd.f32 %v393, %v563
        %v565 = vpop.f32.mrb[0].mxu0
        %v566 = vpop.f32.mrb[0].mxu0
        %v567 = vadd.f32 %v398, %v566
        %v568 = vpop.f32.mrb[0].mxu0
        %569 = vmatprep.mubr.bf16.mxu0 0
        %570 = vmatmul.mubr.bf16.gmra.mrb[0].mxu0 %v494
        %v571 = vpop.f32.mrb[0].mxu0
        %v572 = vadd.f32 %v403, %v571
        %v573 = vpop.f32.mrb[0].mxu0
        %v574 = vpop.f32.mrb[0].mxu0
        %v575 = vadd.f32 %v408, %v574
        %v576 = vpop.f32.mrb[0].mxu0
        %577 = vmatprep.mubr.bf16.mxu0 0
        %578 = vmatmul.mubr.bf16.gmra.mrb[0].mxu0 %v497
        %v579 = vpop.f32.mrb[0].mxu0
        %v580 = vadd.f32 %v413, %v579
        %v581 = vpop.f32.mrb[0].mxu0
        %v582 = vpop.f32.mrb[0].mxu0
        %v583 = vadd.f32 %v418, %v582
        %v584 = vpop.f32.mrb[0].mxu0
        %585 = vmatprep.mubr.bf16.mxu0 0
        %586 = vmatmul.mubr.bf16.gmra.mrb[0].mxu0 %v500
        %v587 = vpop.f32.mrb[0].mxu0
        %v588 = vadd.f32 %v423, %v587
        %v589 = vpop.f32.mrb[0].mxu0
        %v590 = vpop.f32.mrb[0].mxu0
        %v591 = vadd.f32 %v428, %v590
        %v592 = vpop.f32.mrb[0].mxu0
        %593 = vmatprep.mubr.bf16.mxu0 0
        %594 = vmatmul.mubr.bf16.gmra.mrb[0].mxu0 %v503
        %v595 = vpop.f32.mrb[0].mxu0
        %v596 = vadd.f32 %v433, %v595
        %v597 = vpop.f32.mrb[0].mxu0
        %v598 = vpop.f32.mrb[0].mxu0
        %v599 = vadd.f32 %v438, %v598
        %v600 = vpop.f32.mrb[0].mxu0
        %601 = vdwg.mxu0
        %v602 = vmax.f32 %v540, 0.0
        %v603 = vmax.f32 %v543, 0.0
        %v604 = vmax.f32 %v548, 0.0
        %v605 = vmax.f32 %v551, 0.0
        %v606 = vmax.f32 %v556, 0.0
        %v607 = vmax.f32 %v559, 0.0
        %v608 = vmax.f32 %v564, 0.0
        %v609 = vmax.f32 %v567, 0.0
        %v610 = vmax.f32 %v572, 0.0
        %v611 = vmax.f32 %v575, 0.0
        %v612 = vmax.f32 %v580, 0.0
        %v613 = vmax.f32 %v583, 0.0
        %v614 = vmax.f32 %v588, 0.0
        %v615 = vmax.f32 %v591, 0.0
        %v616 = vmax.f32 %v596, 0.0
        %v617 = vmax.f32 %v599, 0.0
        %v618 = vld [vmem:[%s3] sm:$0xf]
        %v619 = vld [vmem:[%s3 + $0x4] sm:$0xf]
        %v620 = vld [vmem:[%s3 + $0x8] sm:$0xf]
        %v621 = vld [vmem:[%s3 + $0xc] sm:$0xf]
        %v622 = vld [vmem:[%s3 + $0x10] sm:$0xf]
        %v623 = vld [vmem:[%s3 + $0x14] sm:$0xf]
        %v624 = vld [vmem:[%s3 + $0x18] sm:$0xf]
        %v625 = vld [vmem:[%s3 + $0x1c] sm:$0xf]
        %v626 = vld [vmem:[%s3 + $0x20] sm:$0xf]
        %v627 = vld [vmem:[%s3 + $0x24] sm:$0xf]
        %v628 = vld [vmem:[%s3 + $0x28] sm:$0xf]
        %v629 = vld [vmem:[%s3 + $0x2c] sm:$0xf]
        %v630 = vld [vmem:[%s3 + $0x30] sm:$0xf]
        %v631 = vld [vmem:[%s3 + $0x34] sm:$0xf]
        %v632 = vld [vmem:[%s3 + $0x38] sm:$0xf]
        %v633 = vld [vmem:[%s3 + $0x3c] sm:$0xf]
        %v634 = vpack.c.bf16 %v603, %v602
        %v635 = vpack.c.bf16 %v605, %v604
        %v636 = vpack.c.bf16 %v607, %v606
        %v637 = vpack.c.bf16 %v609, %v608
        %v638 = vpack.c.bf16 %v611, %v610
        %v639 = vpack.c.bf16 %v613, %v612
        %v640 = vpack.c.bf16 %v615, %v614
        %v641 = vpack.c.bf16 %v617, %v616
        %v642 = vld [vmem:[%s4] sm:$0xff]
        %v643 = vld [vmem:[%s4 + $0x8] sm:$0xff]
        %v644 = vld [vmem:[%s4 + $0x10] sm:$0xff]
        %v645 = vld [vmem:[%s4 + $0x18] sm:$0xff]
        %v646 = vld [vmem:[%s4 + $0x20] sm:$0xff]
        %v647 = vld [vmem:[%s4 + $0x28] sm:$0xff]
        %v648 = vld [vmem:[%s4 + $0x30] sm:$0xff]
        %v649 = vld [vmem:[%s4 + $0x38] sm:$0xff]
        %v650 = vld [vmem:[%s4 + $0x40] sm:$0xff]
        %v651 = vld [vmem:[%s4 + $0x48] sm:$0xff]
        %v652 = vld [vmem:[%s4 + $0x50] sm:$0xff]
        %v653 = vld [vmem:[%s4 + $0x58] sm:$0xff]
        %v654 = vld [vmem:[%s4 + $0x60] sm:$0xff]
        %v655 = vld [vmem:[%s4 + $0x68] sm:$0xff]
        %v656 = vld [vmem:[%s4 + $0x70] sm:$0xff]
        %v657 = vld [vmem:[%s4 + $0x78] sm:$0xff]
        %659 = vset.pattern.permute.xlu0 0
        %660 = vperm.xlu0 %659, %v642
        %v661 = vpop.permute.xlu0 %660
        %664 = vset.pattern.permute.xlu0 0
        %665 = vperm.xlu0 %664, %v643
        %v666 = vpop.permute.xlu0 %665
        %669 = vset.pattern.permute.xlu0 0
        %670 = vperm.xlu0 %669, %v644
        %v671 = vpop.permute.xlu0 %670
        %674 = vset.pattern.permute.xlu0 0
        %675 = vperm.xlu0 %674, %v645
        %v676 = vpop.permute.xlu0 %675
        %679 = vset.pattern.permute.xlu0 0
        %680 = vperm.xlu0 %679, %v646
        %v681 = vpop.permute.xlu0 %680
        %684 = vset.pattern.permute.xlu0 0
        %685 = vperm.xlu0 %684, %v647
        %v686 = vpop.permute.xlu0 %685
        %689 = vset.pattern.permute.xlu0 0
        %690 = vperm.xlu0 %689, %v648
        %v691 = vpop.permute.xlu0 %690
        %694 = vset.pattern.permute.xlu0 0
        %695 = vperm.xlu0 %694, %v649
        %v696 = vpop.permute.xlu0 %695
        %699 = vset.pattern.permute.xlu0 0
        %700 = vperm.xlu0 %699, %v650
        %v701 = vpop.permute.xlu0 %700
        %704 = vset.pattern.permute.xlu0 0
        %705 = vperm.xlu0 %704, %v651
        %v706 = vpop.permute.xlu0 %705
        %709 = vset.pattern.permute.xlu0 0
        %710 = vperm.xlu0 %709, %v652
        %v711 = vpop.permute.xlu0 %710
        %714 = vset.pattern.permute.xlu0 0
        %715 = vperm.xlu0 %714, %v653
        %v716 = vpop.permute.xlu0 %715
        %719 = vset.pattern.permute.xlu0 0
        %720 = vperm.xlu0 %719, %v654
        %v721 = vpop.permute.xlu0 %720
        %724 = vset.pattern.permute.xlu0 0
        %725 = vperm.xlu0 %724, %v655
        %v726 = vpop.permute.xlu0 %725
        %729 = vset.pattern.permute.xlu0 0
        %730 = vperm.xlu0 %729, %v656
        %v731 = vpop.permute.xlu0 %730
        %734 = vset.pattern.permute.xlu0 0
        %735 = vperm.xlu0 %734, %v657
        %v736 = vpop.permute.xlu0 %735
        %v754 = vunpack.c.l.b16 %v618
        %v755 = vunpack.c.l.b16 %v619
        %v756 = vunpack.c.l.b16 %v620
        %v757 = vunpack.c.l.b16 %v621
        %v758 = vunpack.c.l.b16 %v622
        %v759 = vunpack.c.l.b16 %v623
        %v760 = vunpack.c.l.b16 %v624
        %v761 = vunpack.c.l.b16 %v625
        %v762 = vunpack.c.l.b16 %v626
        %v763 = vunpack.c.l.b16 %v627
        %v764 = vunpack.c.l.b16 %v628
        %v765 = vunpack.c.l.b16 %v629
        %v766 = vunpack.c.l.b16 %v630
        %v767 = vunpack.c.l.b16 %v631
        %v768 = vunpack.c.l.b16 %v632
        %v769 = vunpack.c.l.b16 %v633
        %v770 = vpack.c.b16 %v755, %v754
        %v771 = vpack.c.b16 %v757, %v756
        %v772 = vpack.c.b16 %v759, %v758
        %v773 = vpack.c.b16 %v761, %v760
        %v774 = vpack.c.b16 %v763, %v762
        %v775 = vpack.c.b16 %v765, %v764
        %v776 = vpack.c.b16 %v767, %v766
        %v777 = vpack.c.b16 %v769, %v768
        %786 = vmatprep.subr.bf16.mxu0 0
        %787 = vmatpush1.bf16.msra.mxu0 %v634
        %788 = vmatprep.subr.bf16.mxu0 0
        %789 = vmatpush1.bf16.msra.mxu0 %v635
        %790 = vmatprep.subr.bf16.mxu0 0
        %791 = vmatpush1.bf16.msra.mxu0 %v636
        %792 = vmatprep.subr.bf16.mxu0 0
        %793 = vmatpush1.bf16.msra.mxu0 %v637
        %794 = vmatprep.subr.bf16.mxu0 0
        %795 = vmatpush1.bf16.msra.mxu0 %v638
        %796 = vmatprep.subr.bf16.mxu0 0
        %797 = vmatpush1.bf16.msra.mxu0 %v639
        %798 = vmatprep.subr.bf16.mxu0 0
        %799 = vmatpush1.bf16.msra.mxu0 %v640
        %800 = vmatprep.subr.bf16.mxu0 0
        %801 = vmatpush1.bf16.msra.mxu0 %v641
        %802 = vmatprep.subr.bf16.mxu0 0
        %803 = vmatpush1.bf16.msra.mxu0 0
        %804 = vmatprep.subr.bf16.mxu0 0
        %805 = vmatpush1.bf16.msra.mxu0 0
        %806 = vmatprep.subr.bf16.mxu0 0
        %807 = vmatpush1.bf16.msra.mxu0 0
        %808 = vmatprep.subr.bf16.mxu0 0
        %809 = vmatpush1.bf16.msra.mxu0 0
        %810 = vmatprep.subr.bf16.mxu0 0
        %811 = vmatpush1.bf16.msra.mxu0 0
        %812 = vmatprep.subr.bf16.mxu0 0
        %813 = vmatpush1.bf16.msra.mxu0 0
        %814 = vmatprep.subr.bf16.mxu0 0
        %815 = vmatpush1.bf16.msra.mxu0 0
        %816 = vmatprep.subr.bf16.mxu0 0
        %817 = vmatpush1.bf16.msra.mxu0 0
        %818 = vmatprep.mubr.bf16.mxu0 0
        %819 = vmatmul.mubr.bf16.gmra.mrb[0].mxu0 %v770
        %v820 = vpop.f32.mrb[0].mxu0
        %v821 = vadd.f32 %v661, %v820
        %v822 = vpop.f32.mrb[0].mxu0
        %v823 = vpop.f32.mrb[0].mxu0
        %v824 = vadd.f32 %v666, %v823
        %v825 = vpop.f32.mrb[0].mxu0
        %826 = vmatprep.mubr.bf16.mxu0 0
        %827 = vmatmul.mubr.bf16.gmra.mrb[0].mxu0 %v771
        %v828 = vpop.f32.mrb[0].mxu0
        %v829 = vadd.f32 %v671, %v828
        %v830 = vpop.f32.mrb[0].mxu0
        %v831 = vpop.f32.mrb[0].mxu0
        %v832 = vadd.f32 %v676, %v831
        %v833 = vpop.f32.mrb[0].mxu0
        %834 = vmatprep.mubr.bf16.mxu0 0
        %835 = vmatmul.mubr.bf16.gmra.mrb[0].mxu0 %v772
        %v836 = vpop.f32.mrb[0].mxu0
        %v837 = vadd.f32 %v681, %v836
        %v838 = vpop.f32.mrb[0].mxu0
        %v839 = vpop.f32.mrb[0].mxu0
        %v840 = vadd.f32 %v686, %v839
        %v841 = vpop.f32.mrb[0].mxu0
        %842 = vmatprep.mubr.bf16.mxu0 0
        %843 = vmatmul.mubr.bf16.gmra.mrb[0].mxu0 %v773
        %v844 = vpop.f32.mrb[0].mxu0
        %v845 = vadd.f32 %v691, %v844
        %v846 = vpop.f32.mrb[0].mxu0
        %v847 = vpop.f32.mrb[0].mxu0
        %v848 = vadd.f32 %v696, %v847
        %v849 = vpop.f32.mrb[0].mxu0
        %850 = vmatprep.mubr.bf16.mxu0 0
        %851 = vmatmul.mubr.bf16.gmra.mrb[0].mxu0 %v774
        %v852 = vpop.f32.mrb[0].mxu0
        %v853 = vadd.f32 %v701, %v852
        %v854 = vpop.f32.mrb[0].mxu0
        %v855 = vpop.f32.mrb[0].mxu0
        %v856 = vadd.f32 %v706, %v855
        %v857 = vpop.f32.mrb[0].mxu0
        %858 = vmatprep.mubr.bf16.mxu0 0
        %859 = vmatmul.mubr.bf16.gmra.mrb[0].mxu0 %v775
        %v860 = vpop.f32.mrb[0].mxu0
        %v861 = vadd.f32 %v711, %v860
        %v862 = vpop.f32.mrb[0].mxu0
        %v863 = vpop.f32.mrb[0].mxu0
        %v864 = vadd.f32 %v716, %v863
        %v865 = vpop.f32.mrb[0].mxu0
        %866 = vmatprep.mubr.bf16.mxu0 0
        %867 = vmatmul.mubr.bf16.gmra.mrb[0].mxu0 %v776
        %v868 = vpop.f32.mrb[0].mxu0
        %v869 = vadd.f32 %v721, %v868
        %v870 = vpop.f32.mrb[0].mxu0
        %v871 = vpop.f32.mrb[0].mxu0
        %v872 = vadd.f32 %v726, %v871
        %v873 = vpop.f32.mrb[0].mxu0
        %874 = vmatprep.mubr.bf16.mxu0 0
        %875 = vmatmul.mubr.bf16.gmra.mrb[0].mxu0 %v777
        %v876 = vpop.f32.mrb[0].mxu0
        %v877 = vadd.f32 %v731, %v876
        %v878 = vpop.f32.mrb[0].mxu0
        %v879 = vpop.f32.mrb[0].mxu0
        %v880 = vadd.f32 %v736, %v879
        %v881 = vpop.f32.mrb[0].mxu0
        %882 = vdwg.mxu0
        %v883 = vmax.f32 %v821, 0.0
        %v884 = vmax.f32 %v824, 0.0
        %v885 = vmax.f32 %v829, 0.0
        %v886 = vmax.f32 %v832, 0.0
        %v887 = vmax.f32 %v837, 0.0
        %v888 = vmax.f32 %v840, 0.0
        %v889 = vmax.f32 %v845, 0.0
        %v890 = vmax.f32 %v848, 0.0
        %v891 = vmax.f32 %v853, 0.0
        %v892 = vmax.f32 %v856, 0.0
        %v893 = vmax.f32 %v861, 0.0
        %v894 = vmax.f32 %v864, 0.0
        %v895 = vmax.f32 %v869, 0.0
        %v896 = vmax.f32 %v872, 0.0
        %v897 = vmax.f32 %v877, 0.0
        %v898 = vmax.f32 %v880, 0.0
        %v899 = vld [vmem:[%s5] sm:$0xf]
        %v900 = vpack.c.bf16 %v884, %v883
        %v901 = vpack.c.bf16 %v886, %v885
        %v902 = vpack.c.bf16 %v888, %v887
        %v903 = vpack.c.bf16 %v890, %v889
        %v904 = vpack.c.bf16 %v892, %v891
        %v905 = vpack.c.bf16 %v894, %v893
        %v906 = vpack.c.bf16 %v896, %v895
        %v907 = vpack.c.bf16 %v898, %v897
        %908 = vmatprep.subr.bf16.mxu0 0
        %909 = vmatpush1.bf16.msra.mxu0 %v900
        %910 = vmatprep.subr.bf16.mxu0 0
        %911 = vmatpush1.bf16.msra.mxu0 %v901
        %912 = vmatprep.subr.bf16.mxu0 0
        %913 = vmatpush1.bf16.msra.mxu0 %v902
        %914 = vmatprep.subr.bf16.mxu0 0
        %915 = vmatpush1.bf16.msra.mxu0 %v903
        %916 = vmatprep.subr.bf16.mxu0 0
        %917 = vmatpush1.bf16.msra.mxu0 %v904
        %918 = vmatprep.subr.bf16.mxu0 0
        %919 = vmatpush1.bf16.msra.mxu0 %v905
        %920 = vmatprep.subr.bf16.mxu0 0
        %921 = vmatpush1.bf16.msra.mxu0 %v906
        %922 = vmatprep.subr.bf16.mxu0 0
        %923 = vmatpush1.bf16.msra.mxu0 %v907
        %924 = vmatprep.subr.bf16.mxu0 0
        %925 = vmatpush1.bf16.msra.mxu0 0
        %926 = vmatprep.subr.bf16.mxu0 0
        %927 = vmatpush1.bf16.msra.mxu0 0
        %928 = vmatprep.subr.bf16.mxu0 0
        %929 = vmatpush1.bf16.msra.mxu0 0
        %930 = vmatprep.subr.bf16.mxu0 0
        %931 = vmatpush1.bf16.msra.mxu0 0
        %932 = vmatprep.subr.bf16.mxu0 0
        %933 = vmatpush1.bf16.msra.mxu0 0
        %934 = vmatprep.subr.bf16.mxu0 0
        %935 = vmatpush1.bf16.msra.mxu0 0
        %936 = vmatprep.subr.bf16.mxu0 0
        %937 = vmatpush1.bf16.msra.mxu0 0
        %938 = vmatprep.subr.bf16.mxu0 0
        %939 = vmatpush1.bf16.msra.mxu0 0
        %940 = vmatprep.mubr.bf16.mxu0 0
        %941 = vmatmul.mubr.bf16.gmra.mrb[0].mxu0 %v899
        %v942 = vpop.f32.mrb[0].mxu0
        %v943 = vadd.f32 0.0, %v942
        %v944 = vpop.f32.mrb[0].mxu0
        %v945 = vpop.f32.mrb[0].mxu0
        %v946 = vpop.f32.mrb[0].mxu0
        %947 = vdwg.mxu0
        %v948 = vld [vmem:[#allocation2] sm:$0x1]
        %v950 = vlaneseq
        %v951 = vshrl.u32 %v950, 7
        %v952 = vsub.s32 0, %v951
        %v953 = vrot.slane %v948, %v952
        %954 = vset.pattern.permute.xlu0 0
        %955 = vperm.xlu0 %954, %v953
        %v956 = vpop.permute.xlu0 %955
        %v958 = vadd.f32 %v943, %v956
        %959 = vst [vmem:[%s310] sm:$0xf] %v958
        %s960 = sand.u32 %s204, 1
        %s961 = scalar_lea.sflag [#allocation4], %s960
        %s962 = sand.u32 %s204, 1
        %s963 = smul.addr %s962, 4
        %s964 = scalar_lea.vmem [#allocation3], %s963
        // Predicated region
        $region49: #{tpu_custom_call.1} parent=47 // pred_check
          %p965 = pneg %p214
        $region50: #{tpu_custom_call.1} parent=47 // pred_check_branch
          %967 = sbr.rel (%p965) target = $region52
        $region51: #{tpu_custom_call.1} parent=47 // pred_region
          %s969 = ssub.s32 64, 64
          %970 = vsyncadd %s961, %s969
          %s971 = sadd.s32 %s28, %s27
          %s972 = smul.addr %s971, 64
          %s973 = scalar_lea.hbm %s7, %s972
          %s975 = sshll.u32 %s964, 4
          %s976 = int_to_ptr.vmem [resolvable:$true] %s975
          %978 = dma.vmem_to_hbm [thread:$0]  %s976, 64, %s973, %s961
        $region52: #{tpu_custom_call.1} parent=47 // pred_fallthru
          _
      $region48: #{tpu_custom_call.1} parent=5 // pred_fallthru
        _
      %p979 = scmp.le.s32.totalorder 2, %s18
      // Predicated region
      $region53: #{tpu_custom_call.1} parent=5 // pred_check
        %p980 = pneg %p979
      $region54: #{tpu_custom_call.1} parent=5 // pred_check_branch
        %982 = sbr.rel (%p980) target = $region56
      $region55: #{tpu_custom_call.1} parent=5 // pred_region
        %s983 = ssub.s32 %s18, 2
        // Predicated region
        $region57: #{tpu_custom_call.1} parent=55 // pred_check
          %p984 = pneg %p220
        $region58: #{tpu_custom_call.1} parent=55 // pred_check_branch
          %986 = sbr.rel (%p984) target = $region60
        $region59: #{tpu_custom_call.1} parent=55 // pred_region
          %s987 = sand.u32 %s205, 1
          %s988 = scalar_lea.sflag [#allocation4], %s987
          %s989 = sand.u32 %s205, 1
          %s990 = smul.addr %s989, 4
          %s991 = scalar_lea.vmem [#allocation3], %s990
          %992 = dma.done %s988, 64
        $region60: #{tpu_custom_call.1} parent=55 // pred_fallthru
          _
      $region56: #{tpu_custom_call.1} parent=5 // pred_fallthru
        _
    $region6: #{tpu_custom_call.1} parent=1 // loop_footer
      %s22 = sadd.s32 1, %s18
    $region7: #{tpu_custom_call.1} parent=1 // loop_footer_branch
      %17 = sbr.rel target = $region3
    $region8: #{tpu_custom_call.1} parent=1 // loop_exit
      _
    %993 = vsyncpa [#allocation4], 1
    %s994 = scalar_lea.sflag [#allocation4], 1
    %995 = vsyncpa %s994, 1

</llo_original>
